<compile_context>
chip_gen: v5e
topology: v5e:2x2
jax: 0.10.0
libtpu: 0.0.40
codegen_flags: <defaults>
</compile_context>

<pallas_src>
import jax
import jax.numpy as jnp
from jax.experimental import pallas as pl
from jax.experimental.pallas import tpu as pltpu


def kse_kernel(x_ref, hr_ref, wx_ref, wr_ref, b_ref, o_ref):
    d = x_ref.shape[1]  # padded feature dim Dp (multiple of 128)

    # Fused projection: [h_lin | p_lin] = x @ Wx + hr @ Wr + [bh | bp]
    lin = (
        jnp.dot(x_ref[...], wx_ref[...], preferred_element_type=jnp.float32)
        + jnp.dot(hr_ref[...], wr_ref[...], preferred_element_type=jnp.float32)
        + b_ref[...].astype(jnp.float32)
    )  # (bm, 2*Dp), f32

    h_tilde = jnp.tanh(lin[:, :d])        # lane-aligned static slices (free)
    p = jax.nn.sigmoid(lin[:, d:])

    hr = hr_ref[...].astype(jnp.float32)
    # hx = (1 - p) * hr + p * h_tilde  ==  hr + p * (h_tilde - hr)
    o_ref[...] = (hr + p * (h_tilde - hr)).astype(o_ref.dtype)


def _round_up(n, m):
    return ((n + m - 1) // m) * m


def kse_forward(x, hr, wh_t, bh, wp_t, bp, *, block_b=None):
    """x, hr: (B, d_h); wh_t, wp_t: (2*d_h, d_h) (i.e. torch weight transposed);
    bh, bp: (d_h,). Returns (B, d_h)."""
    B, d_h = x.shape
    assert hr.shape == (B, d_h)
    assert wh_t.shape == (2 * d_h, d_h) and wp_t.shape == (2 * d_h, d_h)
    assert bh.shape == (d_h,) and bp.shape == (d_h,)

    # Lane-dense feature dim and 8-aligned batch tiles.
    Dp = _round_up(d_h, 128)
    if block_b is None:
        block_b = min(512, _round_up(B, 8))
    block_b = _round_up(block_b, 8)
    Bp = _round_up(B, block_b)

    pad_f = Dp - d_h

    def split_pad(w_t):
        # (2*d_h, d_h) -> two (Dp, Dp) blocks acting on x and hr respectively.
        wx = jnp.pad(w_t[:d_h, :], ((0, pad_f), (0, pad_f)))
        wr = jnp.pad(w_t[d_h:, :], ((0, pad_f), (0, pad_f)))
        return wx, wr

    wx_h, wr_h = split_pad(wh_t)
    wx_p, wr_p = split_pad(wp_t)
    # Fuse h/p projections along the output axis -> one MXU push per tile.
    wx = jnp.concatenate([wx_h, wx_p], axis=1)          # (Dp, 2*Dp)
    wr = jnp.concatenate([wr_h, wr_p], axis=1)          # (Dp, 2*Dp)
    b = jnp.concatenate(
        [jnp.pad(bh, (0, pad_f)), jnp.pad(bp, (0, pad_f))]
    ).reshape(1, 2 * Dp)

    xp = jnp.pad(x, ((0, Bp - B), (0, pad_f)))
    hrp = jnp.pad(hr, ((0, Bp - B), (0, pad_f)))

    grid = (Bp // block_b,)
    act_spec = pl.BlockSpec((block_b, Dp), lambda i: (i, 0))
    w_spec = pl.BlockSpec((Dp, 2 * Dp), lambda i: (0, 0))   # constant tile
    b_spec = pl.BlockSpec((1, 2 * Dp), lambda i: (0, 0))

    out = pl.pallas_call(
        kse_kernel,
        out_shape=jax.ShapeDtypeStruct((Bp, Dp), x.dtype),
        grid_spec=pltpu.PrefetchScalarGridSpec(
            num_scalar_prefetch=0,
            grid=grid,
            in_specs=[act_spec, act_spec, w_spec, w_spec, b_spec],
            out_specs=act_spec,
        ),
        compiler_params=pltpu.CompilerParams(
            dimension_semantics=("parallel",)),
    )(xp, hrp, wx, wr, b)

    return out[:B, :d_h]


def _xavier_uniform(key, shape):
    # xavier_uniform_ for a (fan_out, fan_in) linear weight
    fan_out, fan_in = shape
    limit = (6.0 / (fan_in + fan_out)) ** 0.5
    return jax.random.uniform(key, shape, jnp.float32, -limit, limit)


def kse_reference(x, hr, wh, bh, wp, bp):
    cat = jnp.concatenate([x, hr], axis=1)
    h_tilde = jnp.tanh(cat @ wh.T + bh)
    p = jax.nn.sigmoid(cat @ wp.T + bp)
    return (1.0 - p) * hr + p * h_tilde


if __name__ == "__main__":
    B, d_h = 8, 32
    key = jax.random.PRNGKey(0)
    k_x, k_hr, k_wh, k_bh, k_wp, k_bp = jax.random.split(key, 6)

    x = jax.random.normal(k_x, (B, d_h), jnp.float32)
    hr = jax.random.normal(k_hr, (B, d_h), jnp.float32)

    # PyTorch nn.Linear(2*d_h, d_h): weight (d_h, 2*d_h), bias (d_h,)
    wh = _xavier_uniform(k_wh, (d_h, 2 * d_h))
    bh = jax.random.uniform(k_bh, (d_h,), jnp.float32, -0.1, 0.1)
    wp = _xavier_uniform(k_wp, (d_h, 2 * d_h))
    bp = jax.random.uniform(k_bp, (d_h,), jnp.float32, -0.1, 0.1)

    out = kse_forward(x, hr, wh.T, bh, wp.T, bp)
    out = jax.block_until_ready(out)

    ref = kse_reference(x, hr, wh, bh, wp, bp)
    assert out.shape == (B, d_h)
    assert jnp.allclose(out, ref, atol=1e-4, rtol=1e-4), "mismatch vs reference"

    print("KERNEL_OK")
</pallas_src>

<mosaic_0001>
module attributes {stable_mosaic.version = 11 : i64} {
  func.func @kse_kernel(%arg0: i32, %arg1: memref<8x128xf32, #tpu.memory_space<vmem>>, %arg2: memref<8x128xf32, #tpu.memory_space<vmem>>, %arg3: memref<128x256xf32, #tpu.memory_space<vmem>>, %arg4: memref<128x256xf32, #tpu.memory_space<vmem>>, %arg5: memref<1x256xf32, #tpu.memory_space<vmem>>, %arg6: memref<8x128xf32, #tpu.memory_space<vmem>>) attributes {dimension_semantics = [#tpu.dimension_semantics<parallel>], iteration_bounds = array<i64: 1>, scalar_prefetch = 0 : i64, scratch_operands = 0 : i64, tpu.core_type = #tpu.core_type<tc>, window_params = [{transform_indices = @transform_0, window_bounds = array<i64: 8, 128>}, {transform_indices = @transform_1, window_bounds = array<i64: 8, 128>}, {pipeline_mode = #tpu.pipeline_mode<synchronous>, transform_indices = @transform_2, window_bounds = array<i64: 128, 256>}, {pipeline_mode = #tpu.pipeline_mode<synchronous>, transform_indices = @transform_3, window_bounds = array<i64: 128, 256>}, {pipeline_mode = #tpu.pipeline_mode<synchronous>, transform_indices = @transform_4, window_bounds = array<i64: 1, 256>}, {transform_indices = @transform_5, window_bounds = array<i64: 8, 128>}]} {
    %c0 = arith.constant 0 : index
    %c0_0 = arith.constant 0 : index
    %0 = vector.load %arg1[%c0, %c0_0] : memref<8x128xf32, #tpu.memory_space<vmem>>, vector<8x128xf32>
    %c0_1 = arith.constant 0 : index
    %c0_2 = arith.constant 0 : index
    %1 = vector.load %arg3[%c0_1, %c0_2] : memref<128x256xf32, #tpu.memory_space<vmem>>, vector<128x256xf32>
    %cst = arith.constant dense<0.000000e+00> : vector<8x256xf32>
    %2 = tpu.matmul %0, %1, %cst {dimension_numbers = #tpu.dot_dimension_numbers<[1], [0], [0], [1], [0, 0, 1, 1], [], []>} : vector<8x128xf32>, vector<128x256xf32>, vector<8x256xf32> -> vector<8x256xf32>
    %c0_3 = arith.constant 0 : index
    %c0_4 = arith.constant 0 : index
    %3 = vector.load %arg2[%c0_3, %c0_4] : memref<8x128xf32, #tpu.memory_space<vmem>>, vector<8x128xf32>
    %c0_5 = arith.constant 0 : index
    %c0_6 = arith.constant 0 : index
    %4 = vector.load %arg4[%c0_5, %c0_6] : memref<128x256xf32, #tpu.memory_space<vmem>>, vector<128x256xf32>
    %cst_7 = arith.constant dense<0.000000e+00> : vector<8x256xf32>
    %5 = tpu.matmul %3, %4, %cst_7 {dimension_numbers = #tpu.dot_dimension_numbers<[1], [0], [0], [1], [0, 0, 1, 1], [], []>} : vector<8x128xf32>, vector<128x256xf32>, vector<8x256xf32> -> vector<8x256xf32>
    %6 = arith.addf %2, %5 : vector<8x256xf32>
    %c0_8 = arith.constant 0 : index
    %c0_9 = arith.constant 0 : index
    %7 = vector.load %arg5[%c0_8, %c0_9] : memref<1x256xf32, #tpu.memory_space<vmem>>, vector<1x256xf32>
    %8 = vector.broadcast %7 : vector<1x256xf32> to vector<8x256xf32>
    %9 = arith.addf %6, %8 : vector<8x256xf32>
    %10 = vector.extract_strided_slice %9 {offsets = [0, 0], sizes = [8, 128], strides = [1, 1]} : vector<8x256xf32> to vector<8x128xf32>
    %11 = math.tanh %10 : vector<8x128xf32>
    %12 = vector.extract_strided_slice %9 {offsets = [0, 128], sizes = [8, 128], strides = [1, 1]} : vector<8x256xf32> to vector<8x128xf32>
    %13 = arith.negf %12 : vector<8x128xf32>
    %14 = math.exp %13 : vector<8x128xf32>
    %cst_10 = arith.constant 1.000000e+00 : f32
    %15 = vector.broadcast %cst_10 : f32 to vector<8x128xf32>
    %16 = arith.addf %15, %14 : vector<8x128xf32>
    %17 = arith.divf %15, %16 : vector<8x128xf32>
    %c0_11 = arith.constant 0 : index
    %c0_12 = arith.constant 0 : index
    %18 = vector.load %arg2[%c0_11, %c0_12] : memref<8x128xf32, #tpu.memory_space<vmem>>, vector<8x128xf32>
    %19 = arith.subf %11, %18 : vector<8x128xf32>
    %20 = arith.mulf %17, %19 : vector<8x128xf32>
    %21 = arith.addf %18, %20 : vector<8x128xf32>
    %c0_13 = arith.constant 0 : index
    %c0_14 = arith.constant 0 : index
    %22 = vector.load %arg6[%c0_13, %c0_14] : memref<8x128xf32, #tpu.memory_space<vmem>>, vector<8x128xf32>
    tpu.vector_store %arg6[%c0_13, %c0_14], %21 {strides = array<i32>} : memref<8x128xf32, #tpu.memory_space<vmem>>, vector<8x128xf32>,
    return
  }
  func.func @transform_0(%arg0: i32) -> (i32, i32) {
    %c0_i32 = arith.constant 0 : i32
    %c0_i32_0 = arith.constant 0 : i32
    return %arg0, %c0_i32 : i32, i32
  }
  func.func @transform_1(%arg0: i32) -> (i32, i32) {
    %c0_i32 = arith.constant 0 : i32
    %c0_i32_0 = arith.constant 0 : i32
    return %arg0, %c0_i32 : i32, i32
  }
  func.func @transform_2(%arg0: i32) -> (i32, i32) {
    %c0_i32 = arith.constant 0 : i32
    %c0_i32_0 = arith.constant 0 : i32
    %c0_i32_1 = arith.constant 0 : i32
    return %c0_i32, %c0_i32_0 : i32, i32
  }
  func.func @transform_3(%arg0: i32) -> (i32, i32) {
    %c0_i32 = arith.constant 0 : i32
    %c0_i32_0 = arith.constant 0 : i32
    %c0_i32_1 = arith.constant 0 : i32
    return %c0_i32, %c0_i32_0 : i32, i32
  }
  func.func @transform_4(%arg0: i32) -> (i32, i32) {
    %c0_i32 = arith.constant 0 : i32
    %c0_i32_0 = arith.constant 0 : i32
    %c0_i32_1 = arith.constant 0 : i32
    return %c0_i32, %c0_i32_0 : i32, i32
  }
  func.func @transform_5(%arg0: i32) -> (i32, i32) {
    %c0_i32 = arith.constant 0 : i32
    %c0_i32_0 = arith.constant 0 : i32
    return %arg0, %c0_i32 : i32, i32
  }
}

</mosaic_0001>

<llo_original>
// kernel: tpu_custom_call.1
$region0: #{tpu_custom_call.1}
  #allocation0 [shape = 'u32[]', space=smem, size = 0x4, offset = 0x4, fixed_abs, tag = 'smem constant byte address 0x4 - core index']
  #allocation1 [shape = 'u32[72,128]{1,0:T(1,128)}', space=vmem, size = 0x9000, scoped, tag = 'internal scratch']
  %s0 = inlined_call_operand.hbm [shape: f32[8,128], index: 0, kind: input, shape index: {}]
  %s1 = inlined_call_operand.hbm [shape: f32[8,128], index: 1, kind: input, shape index: {}]
  %s2 = inlined_call_operand.hbm [shape: f32[128,256], index: 2, kind: input, shape index: {}]
  %s3 = inlined_call_operand.hbm [shape: f32[128,256], index: 3, kind: input, shape index: {}]
  %s4 = inlined_call_operand.vmem [shape: f32[1,256], index: 4, kind: input, shape index: {}]
  %s5 = inlined_call_operand.hbm [shape: f32[8,128], index: 5, kind: output, shape index: {}]
  %s6 = sld [smem:[#allocation0]]
  $region46: #{tpu_custom_call.1} parent=0
    _
  %s8 = ssub.s32 1, %s6
  %s9 = scalar_select 0, %s8, %s6
  $region1: #{tpu_custom_call.1} parent=0
    #allocation2 [shape = 'u8[4096]{0}', space=vmem, size = 0x1000, scoped, tag = 'input window, operand 0, single buffered']
    #allocation3 [shape = 's32[1]{0}', space=sflag, size = 0x4, scoped, tag = 'scoped memory for tpu_custom_call.1']
    #allocation4 [shape = 's32[1]{0}', space=sflag, size = 0x4, scoped, tag = 'scoped memory for tpu_custom_call.1']
    #allocation5 [shape = 'u8[4096]{0}', space=vmem, size = 0x1000, scoped, tag = 'input window, operand 1, single buffered']
    #allocation6 [shape = 's32[1]{0}', space=sflag, size = 0x4, scoped, tag = 'scoped memory for tpu_custom_call.1']
    #allocation7 [shape = 'u8[131072]{0}', space=vmem, size = 0x20000, scoped, tag = 'input window, operand 2, single buffered']
    #allocation8 [shape = 'u8[131072]{0}', space=vmem, size = 0x20000, scoped, tag = 'input window, operand 3, single buffered']
    #allocation9 [shape = 's32[1]{0}', space=sflag, size = 0x4, scoped, tag = 'scoped memory for tpu_custom_call.1']
    #allocation10 [shape = 'u8[4096]{0}', space=vmem, size = 0x1000, scoped, tag = 'output window, operand 0, single buffered']
    %10 = vsyncpa [#allocation3], 0
    %11 = vsyncpa [#allocation6], 0
    %12 = vsyncpa [#allocation9], 0
    %13 = vsyncpa [#allocation4], 0
    // Predicated region
    $region2: #{tpu_custom_call.1} parent=1 // pred_check
      _
    $region3: #{tpu_custom_call.1} parent=1 // pred_check_branch
      %15 = sbr.rel (0) target = $region5
    $region4: #{tpu_custom_call.1} parent=1 // pred_region
      %17 = vsyncadd [#allocation3], 0
      %s19 = sshll.u32 %s0, 4
      %s20 = int_to_ptr.hbm [resolvable:$true] %s19
      %s21 = sshll.u32 [#allocation2], 4
      %s22 = int_to_ptr.vmem [resolvable:$true] %s21
      %24 = dma.hbm_to_vmem [thread:$0]  %s20, 128, %s22, [#allocation3]
    $region5: #{tpu_custom_call.1} parent=1 // pred_fallthru
      _
    // Predicated region
    $region6: #{tpu_custom_call.1} parent=1 // pred_check
      _
    $region7: #{tpu_custom_call.1} parent=1 // pred_check_branch
      %26 = sbr.rel (0) target = $region9
    $region8: #{tpu_custom_call.1} parent=1 // pred_region
      %28 = vsyncadd [#allocation6], 0
      %s30 = sshll.u32 %s1, 4
      %s31 = int_to_ptr.hbm [resolvable:$true] %s30
      %s32 = sshll.u32 [#allocation5], 4
      %s33 = int_to_ptr.vmem [resolvable:$true] %s32
      %35 = dma.hbm_to_vmem [thread:$0]  %s31, 128, %s33, [#allocation6]
    $region9: #{tpu_custom_call.1} parent=1 // pred_fallthru
      _
    // Predicated region
    $region10: #{tpu_custom_call.1} parent=1 // pred_check
      _
    $region11: #{tpu_custom_call.1} parent=1 // pred_check_branch
      %37 = sbr.rel (0) target = $region13
    $region12: #{tpu_custom_call.1} parent=1 // pred_region
      %39 = vsyncadd [#allocation6], 0
      %s40 = sshll.u32 %s2, 4
      %s41 = int_to_ptr.hbm [resolvable:$true] %s40
      %s42 = sshll.u32 [#allocation7], 4
      %s43 = int_to_ptr.vmem [resolvable:$true] %s42
      %48 = dma.hbm_to_vmem [thread:$0]  %s41, 4096, %s43, [#allocation6], 256, 256, 16
    $region13: #{tpu_custom_call.1} parent=1 // pred_fallthru
      _
    // Predicated region
    $region14: #{tpu_custom_call.1} parent=1 // pred_check
      _
    $region15: #{tpu_custom_call.1} parent=1 // pred_check_branch
      %50 = sbr.rel (0) target = $region17
    $region16: #{tpu_custom_call.1} parent=1 // pred_region
      %52 = vsyncadd [#allocation9], 0
      %s53 = sshll.u32 %s3, 4
      %s54 = int_to_ptr.hbm [resolvable:$true] %s53
      %s55 = sshll.u32 [#allocation8], 4
      %s56 = int_to_ptr.vmem [resolvable:$true] %s55
      %61 = dma.hbm_to_vmem [thread:$0]  %s54, 4096, %s56, [#allocation9], 256, 256, 16
    $region17: #{tpu_custom_call.1} parent=1 // pred_fallthru
      _
    // Predicated region
    $region18: #{tpu_custom_call.1} parent=1 // pred_check
      _
    $region19: #{tpu_custom_call.1} parent=1 // pred_check_branch
      %63 = sbr.rel (0) target = $region21
    $region20: #{tpu_custom_call.1} parent=1 // pred_region
      _
    $region21: #{tpu_custom_call.1} parent=1 // pred_fallthru
      _
    // Predicated region
    $region22: #{tpu_custom_call.1} parent=1 // pred_check
      _
    $region23: #{tpu_custom_call.1} parent=1 // pred_check_branch
      %65 = sbr.rel (0) target = $region25
    $region24: #{tpu_custom_call.1} parent=1 // pred_region
      %67 = dma.done [#allocation3], 128
    $region25: #{tpu_custom_call.1} parent=1 // pred_fallthru
      _
    // Predicated region
    $region26: #{tpu_custom_call.1} parent=1 // pred_check
      _
    $region27: #{tpu_custom_call.1} parent=1 // pred_check_branch
      %69 = sbr.rel (0) target = $region29
    $region28: #{tpu_custom_call.1} parent=1 // pred_region
      %71 = dma.done [#allocation6], 128
    $region29: #{tpu_custom_call.1} parent=1 // pred_fallthru
      _
    // Predicated region
    $region30: #{tpu_custom_call.1} parent=1 // pred_check
      _
    $region31: #{tpu_custom_call.1} parent=1 // pred_check_branch
      %73 = sbr.rel (0) target = $region33
    $region32: #{tpu_custom_call.1} parent=1 // pred_region
      %75 = dma.done [#allocation6], 4096
    $region33: #{tpu_custom_call.1} parent=1 // pred_fallthru
      _
    // Predicated region
    $region34: #{tpu_custom_call.1} parent=1 // pred_check
      _
    $region35: #{tpu_custom_call.1} parent=1 // pred_check_branch
      %77 = sbr.rel (0) target = $region37
    $region36: #{tpu_custom_call.1} parent=1 // pred_region
      %79 = dma.done [#allocation9], 4096
    $region37: #{tpu_custom_call.1} parent=1 // pred_fallthru
      _
    %v80 = vld [vmem:[#allocation2] sm:$0xff]
    %v81 = vld [vmem:[#allocation7] sm:$0xff]
    %v82 = vld [vmem:[#allocation7 + $0x8] sm:$0xff]
    %v83 = vld [vmem:[#allocation7 + $0x10] sm:$0xff]
    %v84 = vld [vmem:[#allocation7 + $0x18] sm:$0xff]
    %v85 = vld [vmem:[#allocation7 + $0x20] sm:$0xff]
    %v86 = vld [vmem:[#allocation7 + $0x28] sm:$0xff]
    %v87 = vld [vmem:[#allocation7 + $0x30] sm:$0xff]
    %v88 = vld [vmem:[#allocation7 + $0x38] sm:$0xff]
    %v89 = vld [vmem:[#allocation7 + $0x40] sm:$0xff]
    %v90 = vld [vmem:[#allocation7 + $0x48] sm:$0xff]
    %v91 = vld [vmem:[#allocation7 + $0x50] sm:$0xff]
    %v92 = vld [vmem:[#allocation7 + $0x58] sm:$0xff]
    %v93 = vld [vmem:[#allocation7 + $0x60] sm:$0xff]
    %v94 = vld [vmem:[#allocation7 + $0x68] sm:$0xff]
    %v95 = vld [vmem:[#allocation7 + $0x70] sm:$0xff]
    %v96 = vld [vmem:[#allocation7 + $0x78] sm:$0xff]
    %v97 = vld [vmem:[#allocation7 + $0x80] sm:$0xff]
    %v98 = vld [vmem:[#allocation7 + $0x88] sm:$0xff]
    %v99 = vld [vmem:[#allocation7 + $0x90] sm:$0xff]
    %v100 = vld [vmem:[#allocation7 + $0x98] sm:$0xff]
    %v101 = vld [vmem:[#allocation7 + $0xa0] sm:$0xff]
    %v102 = vld [vmem:[#allocation7 + $0xa8] sm:$0xff]
    %v103 = vld [vmem:[#allocation7 + $0xb0] sm:$0xff]
    %v104 = vld [vmem:[#allocation7 + $0xb8] sm:$0xff]
    %v105 = vld [vmem:[#allocation7 + $0xc0] sm:$0xff]
    %v106 = vld [vmem:[#allocation7 + $0xc8] sm:$0xff]
    %v107 = vld [vmem:[#allocation7 + $0xd0] sm:$0xff]
    %v108 = vld [vmem:[#allocation7 + $0xd8] sm:$0xff]
    %v109 = vld [vmem:[#allocation7 + $0xe0] sm:$0xff]
    %v110 = vld [vmem:[#allocation7 + $0xe8] sm:$0xff]
    %v111 = vld [vmem:[#allocation7 + $0xf0] sm:$0xff]
    %v112 = vld [vmem:[#allocation7 + $0xf8] sm:$0xff]
    %v113 = vld [vmem:[#allocation5] sm:$0xff]
    %v114 = vld [vmem:[#allocation8] sm:$0xff]
    %v115 = vld [vmem:[#allocation8 + $0x8] sm:$0xff]
    %v116 = vld [vmem:[#allocation8 + $0x10] sm:$0xff]
    %v117 = vld [vmem:[#allocation8 + $0x18] sm:$0xff]
    %v118 = vld [vmem:[#allocation8 + $0x20] sm:$0xff]
    %v119 = vld [vmem:[#allocation8 + $0x28] sm:$0xff]
    %v120 = vld [vmem:[#allocation8 + $0x30] sm:$0xff]
    %v121 = vld [vmem:[#allocation8 + $0x38] sm:$0xff]
    %v122 = vld [vmem:[#allocation8 + $0x40] sm:$0xff]
    %v123 = vld [vmem:[#allocation8 + $0x48] sm:$0xff]
    %v124 = vld [vmem:[#allocation8 + $0x50] sm:$0xff]
    %v125 = vld [vmem:[#allocation8 + $0x58] sm:$0xff]
    %v126 = vld [vmem:[#allocation8 + $0x60] sm:$0xff]
    %v127 = vld [vmem:[#allocation8 + $0x68] sm:$0xff]
    %v128 = vld [vmem:[#allocation8 + $0x70] sm:$0xff]
    %v129 = vld [vmem:[#allocation8 + $0x78] sm:$0xff]
    %v130 = vld [vmem:[#allocation8 + $0x80] sm:$0xff]
    %v131 = vld [vmem:[#allocation8 + $0x88] sm:$0xff]
    %v132 = vld [vmem:[#allocation8 + $0x90] sm:$0xff]
    %v133 = vld [vmem:[#allocation8 + $0x98] sm:$0xff]
    %v134 = vld [vmem:[#allocation8 + $0xa0] sm:$0xff]
    %v135 = vld [vmem:[#allocation8 + $0xa8] sm:$0xff]
    %v136 = vld [vmem:[#allocation8 + $0xb0] sm:$0xff]
    %v137 = vld [vmem:[#allocation8 + $0xb8] sm:$0xff]
    %v138 = vld [vmem:[#allocation8 + $0xc0] sm:$0xff]
    %v139 = vld [vmem:[#allocation8 + $0xc8] sm:$0xff]
    %v140 = vld [vmem:[#allocation8 + $0xd0] sm:$0xff]
    %v141 = vld [vmem:[#allocation8 + $0xd8] sm:$0xff]
    %v142 = vld [vmem:[#allocation8 + $0xe0] sm:$0xff]
    %v143 = vld [vmem:[#allocation8 + $0xe8] sm:$0xff]
    %v144 = vld [vmem:[#allocation8 + $0xf0] sm:$0xff]
    %v145 = vld [vmem:[#allocation8 + $0xf8] sm:$0xff]
    %146 = vmatpush.msra.mxu0 %v144
    %147 = vmatpush.msra.mxu0 %v142
    %148 = vmatpush.msra.mxu0 %v140
    %149 = vmatpush.msra.mxu0 %v138
    %150 = vmatpush.msra.mxu0 %v136
    %151 = vmatpush.msra.mxu0 %v134
    %152 = vmatpush.msra.mxu0 %v132
    %153 = vmatpush.msra.mxu0 %v130
    %154 = vmatpush.msra.mxu0 %v128
    %155 = vmatpush.msra.mxu0 %v126
    %156 = vmatpush.msra.mxu0 %v124
    %157 = vmatpush.msra.mxu0 %v122
    %158 = vmatpush.msra.mxu0 %v120
    %159 = vmatpush.msra.mxu0 %v118
    %160 = vmatpush.msra.mxu0 %v116
    %161 = vmatpush.msra.mxu0 %v114
    %162 = vmatmul.f32.gmra.mxu0 %v113
    %v163 = vpop.f32.mrf.mxu0
    %v164 = vadd.f32 0.0, %v163
    %165 = vdwg.mxu0
    %166 = vmatpush.msra.mxu0 %v145
    %167 = vmatpush.msra.mxu0 %v143
    %168 = vmatpush.msra.mxu0 %v141
    %169 = vmatpush.msra.mxu0 %v139
    %170 = vmatpush.msra.mxu0 %v137
    %171 = vmatpush.msra.mxu0 %v135
    %172 = vmatpush.msra.mxu0 %v133
    %173 = vmatpush.msra.mxu0 %v131
    %174 = vmatpush.msra.mxu0 %v129
    %175 = vmatpush.msra.mxu0 %v127
    %176 = vmatpush.msra.mxu0 %v125
    %177 = vmatpush.msra.mxu0 %v123
    %178 = vmatpush.msra.mxu0 %v121
    %179 = vmatpush.msra.mxu0 %v119
    %180 = vmatpush.msra.mxu0 %v117
    %181 = vmatpush.msra.mxu0 %v115
    %182 = vmatmul.f32.gmra.mxu0 %v113
    %v183 = vpop.f32.mrf.mxu0
    %v184 = vadd.f32 0.0, %v183
    %185 = vdwg.mxu0
    %186 = vmatpush.msra.mxu0 %v111
    %187 = vmatpush.msra.mxu0 %v109
    %188 = vmatpush.msra.mxu0 %v107
    %189 = vmatpush.msra.mxu0 %v105
    %190 = vmatpush.msra.mxu0 %v103
    %191 = vmatpush.msra.mxu0 %v101
    %192 = vmatpush.msra.mxu0 %v99
    %193 = vmatpush.msra.mxu0 %v97
    %194 = vmatpush.msra.mxu0 %v95
    %195 = vmatpush.msra.mxu0 %v93
    %196 = vmatpush.msra.mxu0 %v91
    %197 = vmatpush.msra.mxu0 %v89
    %198 = vmatpush.msra.mxu0 %v87
    %199 = vmatpush.msra.mxu0 %v85
    %200 = vmatpush.msra.mxu0 %v83
    %201 = vmatpush.msra.mxu0 %v81
    %202 = vmatmul.f32.gmra.mxu0 %v80
    %v203 = vpop.f32.mrf.mxu0
    %v204 = vadd.f32 %v164, %v203
    %205 = vdwg.mxu0
    %206 = vmatpush.msra.mxu0 %v112
    %207 = vmatpush.msra.mxu0 %v110
    %208 = vmatpush.msra.mxu0 %v108
    %209 = vmatpush.msra.mxu0 %v106
    %210 = vmatpush.msra.mxu0 %v104
    %211 = vmatpush.msra.mxu0 %v102
    %212 = vmatpush.msra.mxu0 %v100
    %213 = vmatpush.msra.mxu0 %v98
    %214 = vmatpush.msra.mxu0 %v96
    %215 = vmatpush.msra.mxu0 %v94
    %216 = vmatpush.msra.mxu0 %v92
    %217 = vmatpush.msra.mxu0 %v90
    %218 = vmatpush.msra.mxu0 %v88
    %219 = vmatpush.msra.mxu0 %v86
    %220 = vmatpush.msra.mxu0 %v84
    %221 = vmatpush.msra.mxu0 %v82
    %222 = vmatmul.f32.gmra.mxu0 %v80
    %v223 = vpop.f32.mrf.mxu0
    %v224 = vadd.f32 %v184, %v223
    %225 = vdwg.mxu0
    %v226 = vld [vmem:[%s4] sm:$0x3]
    %v228 = vperm.slane %v226, 0
    %v229 = vperm.slane %v226, 1
    %v232 = vadd.f32 %v204, %v228
    %v233 = vadd.f32 %v224, %v229
    %v234 = vtanh.pop %v232
    %v235 = vxor.u32 %v233, 2147483648
    %v236 = vmul.f32 %v235, 1.442695
    %v237 = vpow.pop %v236
    %v238 = vadd.f32 %v237, 1.0
    %v239 = vrcp.pop %v238
    %v240 = vmul.f32 %v238, %v239
    %v241 = vsub.f32 1.0, %v240
    %v242 = vmul.f32 %v239, %v241
    %v243 = vadd.f32 %v239, %v242
    %vm244 = vweird.f32 %v238
    %vm245 = vweird.f32 %v239
    %vm246 = vmor %vm244, %vm245
    %v247 = vsel %vm246, %v239, %v243
    %v248 = vand.u32 2147483647, %v238
    %vm249 = vcmp.eq.f32.partialorder %v248, 8.507059e+37
    %v250 = vand.u32 %v238, 2147483648
    %v251 = vor.u32 1.1754944e-38, %v250
    %v252 = vsel %vm249, %v251, %v247
    %v253 = vmul.f32 1.0, %v252
    %v254 = vsub.f32 %v234, %v113
    %v255 = vmul.f32 %v253, %v254
    %v256 = vadd.f32 %v113, %v255
    %257 = vst [vmem:[#allocation10] sm:$0xff] %v256
    // Predicated region
    $region38: #{tpu_custom_call.1} parent=1 // pred_check
      _
    $region39: #{tpu_custom_call.1} parent=1 // pred_check_branch
      %259 = sbr.rel (0) target = $region41
    $region40: #{tpu_custom_call.1} parent=1 // pred_region
      %261 = vsyncadd [#allocation4], 0
      %s263 = sshll.u32 [#allocation10], 4
      %s264 = int_to_ptr.vmem [resolvable:$true] %s263
      %s265 = sshll.u32 %s5, 4
      %s266 = int_to_ptr.hbm [resolvable:$true] %s265
      %268 = dma.vmem_to_hbm [thread:$0]  %s264, 128, %s266, [#allocation4]
    $region41: #{tpu_custom_call.1} parent=1 // pred_fallthru
      _
    // Predicated region
    $region42: #{tpu_custom_call.1} parent=1 // pred_check
      _
    $region43: #{tpu_custom_call.1} parent=1 // pred_check_branch
      %270 = sbr.rel (0) target = $region45
    $region44: #{tpu_custom_call.1} parent=1 // pred_region
      %272 = dma.done [#allocation4], 128
    $region45: #{tpu_custom_call.1} parent=1 // pred_fallthru
      _
    %273 = vsyncpa [#allocation3], 1
    %274 = vsyncpa [#allocation6], 1
    %275 = vsyncpa [#allocation9], 1
    %276 = vsyncpa [#allocation4], 1

</llo_original>
